<compile_context>
chip_gen: v7x
topology: tpu7x:2x2x1
jax: 0.10.0
libtpu: 0.0.40
codegen_flags: <defaults>
</compile_context>

<pallas_src>
import functools

import jax
import jax.numpy as jnp
from jax import lax
from jax.experimental import pallas as pl
from jax.experimental.pallas import tpu as pltpu


def _round_up(x, m):
    return (x + m - 1) // m * m


def _pad2d(a, rows, cols):
    return jnp.pad(a, ((0, rows - a.shape[0]), (0, cols - a.shape[1])))


def _vmem_limit(nbytes):
    # Computed from resident shapes (+50% headroom); floor at the previously
    # proven 32 MiB, cap at 64 MiB so it is also valid on v7x (64 MiB VMEM).
    # TODO(synk): raise the cap towards ~100 MiB on 128 MiB parts (v5e/v6e)
    # for very large graphs instead of adding second-level N/M tiling.
    return int(min(max(int(nbytes * 1.5), 32 << 20), 64 << 20))


def _tree_reduce(vals, op):
    # Reduce a Python list of traced arrays with a log-depth tree (keeps the
    # 8 independent gathers per chunk off a serial add/max chain).
    while len(vals) > 1:
        nxt = [op(vals[i], vals[i + 1]) for i in range(0, len(vals) - 1, 2)]
        if len(vals) % 2:
            nxt.append(vals[-1])
        vals = nxt
    return vals[0]


_CHUNK = 8   # incidences gathered per inner step (fills the 8 sublanes)


# ---------------------------------------------------------------------------
# Kernel 1: X0 = X @ W (Linear, bias=False).  bf16 MXU operands, f32 result.
# ---------------------------------------------------------------------------
def _proj_kernel(x_ref, w_ref, o_ref):
    o_ref[...] = jnp.dot(x_ref[...], w_ref[...],
                         preferred_element_type=jnp.float32)
    # TODO(synk): for large in_channels, tile the K axis with an "arbitrary"
    # reduction grid dim + f32 accumulator scratch (trigger at ~half the
    # budget on v7x's 64 MiB VMEM).


# ---------------------------------------------------------------------------
# Kernel 2+3 fused: hyperedge scatter-mean, per-head attention logits,
# per-vertex segment softmax, attention-weighted sum and residual add.
# Single grid step; all segment loops run over CSR-sorted incidences.
# ---------------------------------------------------------------------------
def _fused_kernel(vbye_sm, eoff_sm, ebyv_sm, voff_sm,      # scalar prefetch
                  x0_ref, a2_ref,                          # VMEM inputs
                  out_ref,                                  # VMEM output
                  xe_scr, alpha_scr,                        # VMEM scratch
                  *, n_nodes, n_edges, negative_slope):
    f_pad = out_ref.shape[1]
    zero_row = jnp.zeros((f_pad,), jnp.float32)

    # ---- 1) hyperedge aggregation: Xe[m] = mean_{incidence (v,m)} X0[v] ----
    xe_scr[...] = jnp.zeros_like(xe_scr)

    def edge_seg(m, carry):
        start = eoff_sm[m]
        end = eoff_sm[m + 1]
        cnt = end - start
        nchunk = (cnt + _CHUNK - 1) // _CHUNK

        def chunk(c, acc):
            base = start + c * _CHUNK
            rows = []
            for j in range(_CHUNK):                      # unrolled: 8 indep. gathers
                idx = base + j
                valid = jnp.where(idx < end, 1.0, 0.0)   # arithmetic mask
                v = vbye_sm[jnp.minimum(idx, end - 1)]   # clamped, in-segment
                rows.append(x0_ref[v, :] * valid)
            return acc + _tree_reduce(rows, jnp.add)

        acc = lax.fori_loop(0, nchunk, chunk, zero_row)
        # scatter-mean: 1/deg folded into the single per-hyperedge store.
        xe_scr[m, :] = acc / jnp.maximum(cnt, 1).astype(jnp.float32)
        return carry

    lax.fori_loop(0, n_edges, edge_seg, 0)

    # ---- 2) per-head logits, expanded over each head's C channels ----------
    # alpha_full[m, h*C + c'] = LeakyReLU(sum_c Xe[m, h, c] * att_e[h, c])
    logits = jnp.dot(xe_scr[...].astype(jnp.bfloat16), a2_ref[...],
                     preferred_element_type=jnp.float32)
    alpha_scr[...] = jnp.where(logits > 0, logits, negative_slope * logits)

    # ---- 3) per-vertex segment softmax + weighted sum + residual -----------
    def vert_seg(v, carry):
        start = voff_sm[v]
        end = voff_sm[v + 1]
        cnt = end - start
        nchunk = (cnt + _CHUNK - 1) // _CHUNK

        # pass A: per-vertex max over incident-edge logits (numerically safe).
        def max_chunk(c, mrow):
            base = start + c * _CHUNK
            vals = [mrow]
            for j in range(_CHUNK):
                idx = base + j
                m_id = ebyv_sm[jnp.minimum(idx, end - 1)]
                # the clamped duplicate belongs to the same segment -> harmless
                vals.append(alpha_scr[m_id, :])
            return _tree_reduce(vals, jnp.maximum)

        mrow = lax.fori_loop(0, nchunk, max_chunk,
                             jnp.full((f_pad,), -1e30, jnp.float32))

        # pass B: softmax denominator + attention-weighted sum of Xe rows.
        def acc_chunk(c, carry):
            den, acc = carry
            base = start + c * _CHUNK
            dens, accs = [], []
            for j in range(_CHUNK):
                idx = base + j
                valid = jnp.where(idx < end, 1.0, 0.0)
                m_id = ebyv_sm[jnp.minimum(idx, end - 1)]
                w = jnp.exp(alpha_scr[m_id, :] - mrow) * valid
                dens.append(w)
                accs.append(w * xe_scr[m_id, :])
            return (den + _tree_reduce(dens, jnp.add),
                    acc + _tree_reduce(accs, jnp.add))

        den, acc = lax.fori_loop(0, nchunk, acc_chunk, (zero_row, zero_row))

        # attn_drop: p = 0.0 -> identity.  One EUP reciprocal per vertex
        # (hoisted out of the per-incidence work), then the residual add.
        inv = pl.reciprocal(den + 1e-16, approx=True)
        out_ref[v, :] = acc * inv + x0_ref[v, :]
        return carry

    lax.fori_loop(0, n_nodes, vert_seg, 0)
    # TODO(synk): on v7x split the segment ranges across the 2 TensorCores
    # (core_map / core-parallel leading axis) with associative partial merges.


# ---------------------------------------------------------------------------
# Wrapper
# ---------------------------------------------------------------------------
def unigat_conv(X, vertex, edges, W, att_e, num_edges,
                negative_slope=0.2, node_tile=256):
    """Pallas UniGATConv forward.

    X:      [N, in_channels] f32
    vertex: [E] int32 node index of each incidence
    edges:  [E] int32 hyperedge index of each incidence
    W:      [in_channels, H*C] f32 (already-transposed Linear weight)
    att_e:  [H, C] f32
    """
    N, fin = X.shape
    H, C = att_e.shape
    F = H * C
    M = int(num_edges)
    E = int(vertex.shape[0])

    # Lane-dense padding (feature widths -> multiples of 128, rows -> 16/8).
    f_pad = _round_up(F, 128)
    k_pad = _round_up(fin, 128)
    tn = min(node_tile, _round_up(N, 16))
    n_pad = _round_up(N, tn)
    m_pad = _round_up(M, 8)

    xp = _pad2d(X, n_pad, k_pad).astype(jnp.bfloat16)
    wp = _pad2d(W, k_pad, f_pad).astype(jnp.bfloat16)

    # A2[h*C + c, h*C + c'] = att_e[h, c]:  Xe @ A2 = per-head logit expanded
    # over the C channels of its head (sum-over-C + broadcast in one MXU op).
    eye_h = jnp.eye(H, dtype=jnp.float32)
    a2 = (att_e[:, :, None, None] * eye_h[:, None, :, None]
          * jnp.ones((1, 1, 1, C), jnp.float32)).reshape(F, F)
    a2 = _pad2d(a2, f_pad, f_pad).astype(jnp.bfloat16)

    vertex = vertex.astype(jnp.int32)
    edges = edges.astype(jnp.int32)

    # CSR-style sorted incidence lists (glue): the kernel reduces each segment
    # over a contiguous range -> one store per segment, no scatter RMW chains.
    perm_e = jnp.argsort(edges)
    vert_by_edge = vertex[perm_e]
    e_cnt = jnp.zeros((M,), jnp.int32).at[edges].add(1)
    e_off = jnp.concatenate([jnp.zeros((1,), jnp.int32),
                             jnp.cumsum(e_cnt, dtype=jnp.int32)])

    perm_v = jnp.argsort(vertex)
    edge_by_vert = edges[perm_v]
    v_cnt = jnp.zeros((N,), jnp.int32).at[vertex].add(1)
    v_off = jnp.concatenate([jnp.zeros((1,), jnp.int32),
                             jnp.cumsum(v_cnt, dtype=jnp.int32)])
    # TODO(synk): beyond ~1e5 incidences these SMEM-prefetched index arrays
    # will not fit; chunk them per E-tile (DMA a tile of indices per step).

    # ---- kernel 1: projection (N-tiled, "parallel" for megacore) -----------
    proj_bytes = 2 * (tn * k_pad * 2 + k_pad * f_pad * 2 + tn * f_pad * 4)
    x0 = pl.pallas_call(
        _proj_kernel,
        out_shape=jax.ShapeDtypeStruct((n_pad, f_pad), jnp.float32),
        grid=(n_pad // tn,),
        in_specs=[pl.BlockSpec((tn, k_pad), lambda i: (i, 0)),
                  pl.BlockSpec((k_pad, f_pad), lambda i: (0, 0))],
        out_specs=pl.BlockSpec((tn, f_pad), lambda i: (i, 0)),
        compiler_params=pltpu.CompilerParams(
            dimension_semantics=("parallel",),
            vmem_limit_bytes=_vmem_limit(proj_bytes)),
    )(xp, wp)
    # TODO(synk): emit X0 as bf16 (f32 accumulation kept) to halve its HBM
    # write / re-read once bf16 dynamic row gathers are validated on all gens.

    # ---- fused kernel 2+3: edge mean + logits + segment softmax + residual -
    fused_bytes = (2 * (n_pad * f_pad * 4            # x0 (double-buffered)
                        + f_pad * f_pad * 2          # a2
                        + n_pad * f_pad * 4)         # out
                   + 2 * m_pad * f_pad * 4)          # xe + alpha scratch
    fused = functools.partial(_fused_kernel, n_nodes=N, n_edges=M,
                              negative_slope=negative_slope)
    out = pl.pallas_call(
        fused,
        out_shape=jax.ShapeDtypeStruct((n_pad, f_pad), jnp.float32),
        grid_spec=pltpu.PrefetchScalarGridSpec(
            num_scalar_prefetch=4,
            grid=(1,),
            in_specs=[pl.BlockSpec((n_pad, f_pad), lambda i, a, b, c, d: (0, 0)),
                      pl.BlockSpec((f_pad, f_pad), lambda i, a, b, c, d: (0, 0))],
            out_specs=pl.BlockSpec((n_pad, f_pad), lambda i, a, b, c, d: (0, 0)),
            scratch_shapes=[pltpu.VMEM((m_pad, f_pad), jnp.float32),
                            pltpu.VMEM((m_pad, f_pad), jnp.float32)]),
        compiler_params=pltpu.CompilerParams(
            dimension_semantics=("arbitrary",),
            vmem_limit_bytes=_vmem_limit(fused_bytes)),
    )(vert_by_edge, e_off, edge_by_vert, v_off, x0, a2)

    return out[:N, :F]


# ---------------------------------------------------------------------------
# Plain-JAX reference mirroring the PyTorch module.
# ---------------------------------------------------------------------------
def ref_forward(X, vertex, edges, W, att_e, num_edges, negative_slope=0.2,
                bf16_projection=False):
    N = X.shape[0]
    H, C = att_e.shape
    if bf16_projection:
        X0 = jnp.dot(X.astype(jnp.bfloat16), W.astype(jnp.bfloat16),
                     preferred_element_type=jnp.float32)
    else:
        X0 = X @ W
    Xr = X0.reshape(N, H, C)
    Xve = Xr[vertex]
    s = jax.ops.segment_sum(Xve, edges, num_segments=num_edges)
    cnt = jax.ops.segment_sum(jnp.ones((vertex.shape[0],), jnp.float32),
                              edges, num_segments=num_edges)
    Xe = s / jnp.maximum(cnt, 1.0)[:, None, None]
    alpha_e = (Xe * att_e[None]).sum(-1)
    a_ev = alpha_e[edges]
    alpha = jnp.where(a_ev > 0, a_ev, negative_slope * a_ev)
    m = jax.ops.segment_max(alpha, vertex, num_segments=N)
    ex = jnp.exp(alpha - m[vertex])
    den = jax.ops.segment_sum(ex, vertex, num_segments=N)
    alpha = ex / (den[vertex] + 1e-16)
    Xev = Xe[edges] * alpha[:, :, None]
    Xv = jax.ops.segment_sum(Xev, vertex, num_segments=N)
    return Xv.reshape(N, H * C) + X0


if __name__ == "__main__":
    key = jax.random.PRNGKey(0)
    in_channels, out_channels, heads = 16, 8, 2
    N, E, M = 12, 24, 6

    k1, k2, k3, k4 = jax.random.split(key, 4)
    X = jax.random.normal(k1, (N, in_channels), jnp.float32)
    vertex = jax.random.randint(k2, (E,), 0, N, dtype=jnp.int32)
    edges = (jnp.arange(E, dtype=jnp.int32) % M)      # every edge id appears

    stdv_w = 1.0 / (in_channels ** 0.5)
    W = jax.random.uniform(k3, (in_channels, heads * out_channels),
                           jnp.float32, -stdv_w, stdv_w)
    stdv_a = (6.0 / (heads + out_channels)) ** 0.5    # glorot on (1, H, C)
    att_e = jax.random.uniform(k4, (heads, out_channels), jnp.float32,
                               -stdv_a, stdv_a)
    # TODO(synk): att_v is initialized by the module but never used in forward.

    out = unigat_conv(X, vertex, edges, W, att_e, M)
    out = jax.block_until_ready(out)
    assert out.shape == (N, heads * out_channels)

    # Tight check against a reference that quantizes the projection to bf16
    # exactly like the kernel's MXU operands (isolates the intended cast).
    ref_q = ref_forward(X, vertex, edges, W, att_e, M, bf16_projection=True)
    assert jnp.allclose(out, ref_q, rtol=1e-2, atol=1e-2), \
        float(jnp.max(jnp.abs(out - ref_q)))
    # Loose sanity check against the pure-f32 module math (bf16 MXU inputs).
    ref = ref_forward(X, vertex, edges, W, att_e, M, bf16_projection=False)
    assert jnp.allclose(out, ref, rtol=1e-1, atol=1e-1), \
        float(jnp.max(jnp.abs(out - ref)))

    print("KERNEL_OK")
</pallas_src>

<mosaic_0001>
module attributes {stable_mosaic.version = 11 : i64} {
  func.func @_proj_kernel(%arg0: i32, %arg1: memref<16x128xbf16, #tpu.memory_space<vmem>>, %arg2: memref<128x128xbf16, #tpu.memory_space<vmem>>, %arg3: memref<16x128xf32, #tpu.memory_space<vmem>>) attributes {dimension_semantics = [#tpu.dimension_semantics<parallel>], iteration_bounds = array<i64: 1>, scalar_prefetch = 0 : i64, scratch_operands = 0 : i64, tpu.core_type = #tpu.core_type<tc>, window_params = [{transform_indices = @transform_0, window_bounds = array<i64: 16, 128>}, {pipeline_mode = #tpu.pipeline_mode<synchronous>, transform_indices = @transform_1, window_bounds = array<i64: 128, 128>}, {transform_indices = @transform_2, window_bounds = array<i64: 16, 128>}]} {
    %c0 = arith.constant 0 : index
    %c0_0 = arith.constant 0 : index
    %0 = vector.load %arg1[%c0, %c0_0] : memref<16x128xbf16, #tpu.memory_space<vmem>>, vector<16x128xbf16>
    %c0_1 = arith.constant 0 : index
    %c0_2 = arith.constant 0 : index
    %1 = vector.load %arg2[%c0_1, %c0_2] : memref<128x128xbf16, #tpu.memory_space<vmem>>, vector<128x128xbf16>
    %cst = arith.constant dense<0.000000e+00> : vector<16x128xf32>
    %2 = tpu.matmul %0, %1, %cst {dimension_numbers = #tpu.dot_dimension_numbers<[1], [0], [0], [1], [0, 0, 1, 1], [], []>} : vector<16x128xbf16>, vector<128x128xbf16>, vector<16x128xf32> -> vector<16x128xf32>
    %c0_3 = arith.constant 0 : index
    %c0_4 = arith.constant 0 : index
    %3 = vector.load %arg3[%c0_3, %c0_4] : memref<16x128xf32, #tpu.memory_space<vmem>>, vector<16x128xf32>
    tpu.vector_store %arg3[%c0_3, %c0_4], %2 {strides = array<i32>} : memref<16x128xf32, #tpu.memory_space<vmem>>, vector<16x128xf32>,
    return
  }
  func.func @transform_0(%arg0: i32) -> (i32, i32) {
    %c0_i32 = arith.constant 0 : i32
    %c0_i32_0 = arith.constant 0 : i32
    return %arg0, %c0_i32 : i32, i32
  }
  func.func @transform_1(%arg0: i32) -> (i32, i32) {
    %c0_i32 = arith.constant 0 : i32
    %c0_i32_0 = arith.constant 0 : i32
    %c0_i32_1 = arith.constant 0 : i32
    return %c0_i32, %c0_i32_0 : i32, i32
  }
  func.func @transform_2(%arg0: i32) -> (i32, i32) {
    %c0_i32 = arith.constant 0 : i32
    %c0_i32_0 = arith.constant 0 : i32
    return %arg0, %c0_i32 : i32, i32
  }
}

</mosaic_0001>

<llo_original>
// kernel: tpu_custom_call.1
$region0: #{tpu_custom_call.1}
  #allocation0 [shape = 'u32[]', space=smem, size = 0x4, offset = 0x4, fixed_abs, tag = 'smem constant byte address 0x4 - core index']
  #allocation1 [shape = 'u32[144,128]{1,0:T(1,128)}', space=vmem, size = 0x12000, scoped, tag = 'internal scratch']
  %s0 = inlined_call_operand.hbm [shape: bf16[16,128], index: 0, kind: input, shape index: {}]
  %s1 = inlined_call_operand.hbm [shape: bf16[128,128], index: 1, kind: input, shape index: {}]
  %s2 = inlined_call_operand.hbm [shape: f32[16,128], index: 2, kind: output, shape index: {}]
  %s3 = sld [smem:[#allocation0]]
  $region26: #{tpu_custom_call.1} parent=0
    _
  %s5 = ssub.s32 1, %s3
  %s6 = scalar_select 0, %s5, %s3
  $region1: #{tpu_custom_call.1} parent=0
    #allocation2 [shape = 'u8[4096]{0}', space=vmem, size = 0x1000, scoped, tag = 'input window, operand 0, single buffered']
    #allocation3 [shape = 's32[1]{0}', space=sflag, size = 0x4, scoped, tag = 'scoped memory for tpu_custom_call.1']
    #allocation4 [shape = 's32[1]{0}', space=sflag, size = 0x4, scoped, tag = 'scoped memory for tpu_custom_call.1']
    #allocation5 [shape = 'u8[32768]{0}', space=vmem, size = 0x8000, scoped, tag = 'input window, operand 1, single buffered']
    #allocation6 [shape = 's32[1]{0}', space=sflag, size = 0x4, scoped, tag = 'scoped memory for tpu_custom_call.1']
    #allocation7 [shape = 'u8[8192]{0}', space=vmem, size = 0x2000, scoped, tag = 'output window, operand 0, single buffered']
    %7 = vsyncpa [#allocation3], 0
    %8 = vsyncpa [#allocation6], 0
    %9 = vsyncpa [#allocation4], 0
    // Predicated region
    $region2: #{tpu_custom_call.1} parent=1 // pred_check
      _
    $region3: #{tpu_custom_call.1} parent=1 // pred_check_branch
      %11 = sbr.rel (0) target = $region5
    $region4: #{tpu_custom_call.1} parent=1 // pred_region
      %s13 = ssub.s32 128, 128
      %14 = vsyncadd [#allocation3], %s13
      %s15 = sshll.u32 [#allocation2], 4
      %s16 = int_to_ptr.vmem [resolvable:$true] %s15
      %21 = dma.hbm_to_vmem [thread:$0]  %s0, 128, %s16, [#allocation3], 64, 64, 4
    $region5: #{tpu_custom_call.1} parent=1 // pred_fallthru
      _
    // Predicated region
    $region6: #{tpu_custom_call.1} parent=1 // pred_check
      _
    $region7: #{tpu_custom_call.1} parent=1 // pred_check_branch
      %23 = sbr.rel (0) target = $region9
    $region8: #{tpu_custom_call.1} parent=1 // pred_region
      %s25 = ssub.s32 1024, 1024
      %26 = vsyncadd [#allocation6], %s25
      %s27 = sshll.u32 [#allocation5], 4
      %s28 = int_to_ptr.vmem [resolvable:$true] %s27
      %33 = dma.hbm_to_vmem [thread:$0]  %s1, 1024, %s28, [#allocation6], 64, 64, 4
    $region9: #{tpu_custom_call.1} parent=1 // pred_fallthru
      _
    // Predicated region
    $region10: #{tpu_custom_call.1} parent=1 // pred_check
      _
    $region11: #{tpu_custom_call.1} parent=1 // pred_check_branch
      %35 = sbr.rel (0) target = $region13
    $region12: #{tpu_custom_call.1} parent=1 // pred_region
      %36 = dma.done [#allocation3], 128
    $region13: #{tpu_custom_call.1} parent=1 // pred_fallthru
      _
    // Predicated region
    $region14: #{tpu_custom_call.1} parent=1 // pred_check
      _
    $region15: #{tpu_custom_call.1} parent=1 // pred_check_branch
      %38 = sbr.rel (0) target = $region17
    $region16: #{tpu_custom_call.1} parent=1 // pred_region
      %39 = dma.done [#allocation6], 1024
    $region17: #{tpu_custom_call.1} parent=1 // pred_fallthru
      _
    %v41 = vld [vmem:[#allocation2] sm:$0xf]
    %v42 = vld [vmem:[#allocation2 + $0x4] sm:$0xf]
    %v43 = vld [vmem:[#allocation5] sm:$0xf]
    %v44 = vld [vmem:[#allocation5 + $0x4] sm:$0xf]
    %v45 = vld [vmem:[#allocation5 + $0x8] sm:$0xf]
    %v46 = vld [vmem:[#allocation5 + $0xc] sm:$0xf]
    %v47 = vld [vmem:[#allocation5 + $0x10] sm:$0xf]
    %v48 = vld [vmem:[#allocation5 + $0x14] sm:$0xf]
    %v49 = vld [vmem:[#allocation5 + $0x18] sm:$0xf]
    %v50 = vld [vmem:[#allocation5 + $0x1c] sm:$0xf]
    %v51 = vld [vmem:[#allocation5 + $0x20] sm:$0xf]
    %v52 = vld [vmem:[#allocation5 + $0x24] sm:$0xf]
    %v53 = vld [vmem:[#allocation5 + $0x28] sm:$0xf]
    %v54 = vld [vmem:[#allocation5 + $0x2c] sm:$0xf]
    %v55 = vld [vmem:[#allocation5 + $0x30] sm:$0xf]
    %v56 = vld [vmem:[#allocation5 + $0x34] sm:$0xf]
    %v57 = vld [vmem:[#allocation5 + $0x38] sm:$0xf]
    %v58 = vld [vmem:[#allocation5 + $0x3c] sm:$0xf]
    %v61 = vunpack.c.l.b16 %v41
    %v62 = vunpack.c.l.b16 %v42
    %v63 = vpack.c.b16 %v62, %v61
    %v81 = vunpack.c.l.b16 %v43
    %v82 = vunpack.c.l.b16 %v44
    %v83 = vunpack.c.l.b16 %v45
    %v84 = vunpack.c.l.b16 %v46
    %v85 = vunpack.c.l.b16 %v47
    %v86 = vunpack.c.l.b16 %v48
    %v87 = vunpack.c.l.b16 %v49
    %v88 = vunpack.c.l.b16 %v50
    %v89 = vunpack.c.l.b16 %v51
    %v90 = vunpack.c.l.b16 %v52
    %v91 = vunpack.c.l.b16 %v53
    %v92 = vunpack.c.l.b16 %v54
    %v93 = vunpack.c.l.b16 %v55
    %v94 = vunpack.c.l.b16 %v56
    %v95 = vunpack.c.l.b16 %v57
    %v96 = vunpack.c.l.b16 %v58
    %v97 = vpack.c.b16 %v82, %v81
    %v98 = vpack.c.b16 %v84, %v83
    %v99 = vpack.c.b16 %v86, %v85
    %v100 = vpack.c.b16 %v88, %v87
    %v101 = vpack.c.b16 %v90, %v89
    %v102 = vpack.c.b16 %v92, %v91
    %v103 = vpack.c.b16 %v94, %v93
    %v104 = vpack.c.b16 %v96, %v95
    %113 = vmatprep.subr.bf16.mxu0 0
    %114 = vmatpush1.bf16.msra.mxu0 %v97
    %115 = vmatprep.subr.bf16.mxu0 0
    %116 = vmatpush1.bf16.msra.mxu0 %v98
    %117 = vmatprep.subr.bf16.mxu0 0
    %118 = vmatpush1.bf16.msra.mxu0 %v99
    %119 = vmatprep.subr.bf16.mxu0 0
    %120 = vmatpush1.bf16.msra.mxu0 %v100
    %121 = vmatprep.subr.bf16.mxu0 0
    %122 = vmatpush1.bf16.msra.mxu0 %v101
    %123 = vmatprep.subr.bf16.mxu0 0
    %124 = vmatpush1.bf16.msra.mxu0 %v102
    %125 = vmatprep.subr.bf16.mxu0 0
    %126 = vmatpush1.bf16.msra.mxu0 %v103
    %127 = vmatprep.subr.bf16.mxu0 0
    %128 = vmatpush1.bf16.msra.mxu0 %v104
    %129 = vmatprep.subr.bf16.mxu0 0
    %130 = vmatpush1.bf16.msra.mxu0 0
    %131 = vmatprep.subr.bf16.mxu0 0
    %132 = vmatpush1.bf16.msra.mxu0 0
    %133 = vmatprep.subr.bf16.mxu0 0
    %134 = vmatpush1.bf16.msra.mxu0 0
    %135 = vmatprep.subr.bf16.mxu0 0
    %136 = vmatpush1.bf16.msra.mxu0 0
    %137 = vmatprep.subr.bf16.mxu0 0
    %138 = vmatpush1.bf16.msra.mxu0 0
    %139 = vmatprep.subr.bf16.mxu0 0
    %140 = vmatpush1.bf16.msra.mxu0 0
    %141 = vmatprep.subr.bf16.mxu0 0
    %142 = vmatpush1.bf16.msra.mxu0 0
    %143 = vmatprep.subr.bf16.mxu0 0
    %144 = vmatpush1.bf16.msra.mxu0 0
    %145 = vmatprep.mubr.bf16.mxu0 0
    %146 = vmatmul.mubr.bf16.gmra.mrb[0].mxu0 %v63
    %v147 = vpop.f32.mrb[0].mxu0
    %v148 = vadd.f32 0.0, %v147
    %v149 = vpop.f32.mrb[0].mxu0
    %v150 = vpop.f32.mrb[0].mxu0
    %v151 = vadd.f32 0.0, %v150
    %v152 = vpop.f32.mrb[0].mxu0
    %153 = vdwg.mxu0
    %154 = vst [vmem:[#allocation7] sm:$0xff] %v148
    %155 = vst [vmem:[#allocation7 + $0x8] sm:$0xff] %v151
    // Predicated region
    $region18: #{tpu_custom_call.1} parent=1 // pred_check
      _
    $region19: #{tpu_custom_call.1} parent=1 // pred_check_branch
      %157 = sbr.rel (0) target = $region21
    $region20: #{tpu_custom_call.1} parent=1 // pred_region
      %s159 = ssub.s32 256, 256
      %160 = vsyncadd [#allocation4], %s159
      %s161 = sshll.u32 [#allocation7], 4
      %s162 = int_to_ptr.vmem [resolvable:$true] %s161
      %167 = dma.vmem_to_hbm [thread:$0]  %s162, 256, %s2, [#allocation4], 128, 128, 8
    $region21: #{tpu_custom_call.1} parent=1 // pred_fallthru
      _
    // Predicated region
    $region22: #{tpu_custom_call.1} parent=1 // pred_check
      _
    $region23: #{tpu_custom_call.1} parent=1 // pred_check_branch
      %169 = sbr.rel (0) target = $region25
    $region24: #{tpu_custom_call.1} parent=1 // pred_region
      %170 = dma.done [#allocation4], 256
    $region25: #{tpu_custom_call.1} parent=1 // pred_fallthru
      _
    %171 = vsyncpa [#allocation3], 1
    %172 = vsyncpa [#allocation6], 1
    %173 = vsyncpa [#allocation4], 1

</llo_original>
